<compile_context>
chip_gen: v5e
topology: v5e:2x2
jax: 0.10.0
libtpu: 0.0.40
codegen_flags: <defaults>
</compile_context>

<pallas_src>
import math
from functools import partial

import jax
import jax.numpy as jnp
from jax.experimental import pallas as pl
from jax.experimental.pallas import tpu as pltpu


_LANE = 128          # minimum lane alignment for unmasked vector stores
_MAX_LANES = 1024    # widest lane-dense layout we try


def make_log_scale(dim: int, budget: str) -> float:
    if budget == "exp-half":
        return 0.5 * dim
    elif budget == "exp":
        return float(dim)
    elif budget == "normal":
        return 0.5 * math.log(4 * math.pi) * dim
    else:  # 'constant'
        return 0.0


def _evidence_scaler_kernel(x_ref, o_ref, *, bias: float):
    # Elementwise hot path: one mul + one add + clamp, computed in f32
    # (log_scale can be O(1e3) for large latent dims), cast back on store.
    x = x_ref[...].astype(jnp.float32)
    y = x * jnp.float32(0.1) + jnp.float32(bias)
    o_ref[...] = jnp.clip(y, -30.0, 30.0).astype(o_ref.dtype)


def _pick_lanes(n: int):
    """Widest lane dim in {1024, 512, 256, 128} dividing n, or None."""
    if n % _LANE != 0:
        return None
    lanes = _MAX_LANES
    while n % lanes != 0:
        lanes //= 2
    return lanes


def _target_block_elems() -> int:
    """Per-generation block size (in elements).

    v7x HBM (~3.2 TB/s per TC) makes the ~0.35 us fixed per-grid-step cost
    proportionally larger, so grow the block there (4 MiB f32 blocks ->
    16 MiB of double-buffered in+out, under the 32 MiB scoped-VMEM default).
    v5e must stay at 2 MiB blocks (16 MiB scoped-VMEM default); v6e gains
    ~1% from bigger blocks, not worth a separate path.
    """
    try:
        kind = jax.devices()[0].device_kind.lower()
    except Exception:
        kind = ""
    if "v7" in kind:
        return 1024 * 1024
    return 512 * 1024


def evidence_scaler_ref(log_evidence: jax.Array, dim: int, budget: str = "normal") -> jax.Array:
    """Pure-JAX reference (exact PyTorch formula). Also the dispatch target
    for irregular sizes and the preferred path when this op can be fused
    into a neighbouring kernel."""
    log_scale = make_log_scale(dim, budget)
    y = (log_evidence.astype(jnp.float32) + jnp.float32(log_scale)) / 10.0
    return jnp.clip(y, -30.0, 30.0).astype(log_evidence.dtype)


def evidence_scaler(log_evidence: jax.Array, dim: int, budget: str = "normal") -> jax.Array:
    """Pallas-backed EvidenceScaler.forward.

    log_evidence: any-shaped float array (typically [batch, dim_latent]).
    """
    # TODO(synk): clamp_preserve_gradients' straight-through backward is not
    # implemented (no custom_vjp); forward values are identical.
    log_scale = float(make_log_scale(dim, budget))
    orig_shape = log_evidence.shape
    out_dtype = log_evidence.dtype

    n = math.prod(orig_shape) if orig_shape else 1
    if n == 0:
        return log_evidence

    lanes = _pick_lanes(n)
    if lanes is None:
        # Irregular size: padding + slicing would double HBM traffic for a
        # bandwidth-bound op, so just use the fused XLA path.
        return evidence_scaler_ref(log_evidence, dim, budget)

    # Lane-dense layout plumbing (free reshapes: contiguous row-major).
    rows = n // lanes
    x2d = log_evidence.reshape(rows, lanes)

    # Row tiling: keep block bytes ~constant regardless of lane width.
    max_rows = max(8, _target_block_elems() // lanes)   # multiple of 8
    if rows <= 8:
        tile_rows = rows                                  # single tiny block
    elif rows < 2 * max_rows:
        # Split into two balanced blocks so both v7x TensorCores get work.
        tile_rows = min(max_rows, ((pl.cdiv(rows, 2) + 7) // 8) * 8)
    else:
        tile_rows = max_rows
    grid = (pl.cdiv(rows, tile_rows),)

    kernel = partial(_evidence_scaler_kernel, bias=log_scale / 10.0)
    out2d = pl.pallas_call(
        kernel,
        out_shape=jax.ShapeDtypeStruct((rows, lanes), out_dtype),
        grid=grid,
        in_specs=[
            pl.BlockSpec(
                (tile_rows, lanes),
                lambda i: (i, 0),
                memory_space=pltpu.MemorySpace.VMEM,
            )
        ],
        out_specs=pl.BlockSpec(
            (tile_rows, lanes),
            lambda i: (i, 0),
            memory_space=pltpu.MemorySpace.VMEM,
        ),
        compiler_params=pltpu.CompilerParams(
            dimension_semantics=("parallel",),
        ),
    )(x2d)

    return out2d.reshape(orig_shape)


if __name__ == "__main__":
    key = jax.random.PRNGKey(0)
    budget = "normal"

    # Primary example: [batch, dim_latent] evidence tensor, latent dim = 32.
    batch, dim = 16, 32
    # Spread values widely so the clamp actually triggers for some elements.
    log_evidence = jax.random.normal(key, (batch, dim), dtype=jnp.float32) * 200.0

    out = evidence_scaler(log_evidence, dim=dim, budget=budget)
    out = jax.block_until_ready(out)
    ref = evidence_scaler_ref(log_evidence, dim=dim, budget=budget)
    assert out.shape == ref.shape and out.dtype == ref.dtype
    assert jnp.allclose(out, ref, atol=1e-5, rtol=1e-5), "mismatch vs reference"

    # Exercise the multi-block path (rows > 8 -> grid of 2 balanced blocks).
    k2 = jax.random.PRNGKey(1)
    x2 = jax.random.normal(k2, (32, 384), dtype=jnp.float32) * 200.0
    out2 = jax.block_until_ready(evidence_scaler(x2, dim=384, budget=budget))
    ref2 = evidence_scaler_ref(x2, dim=384, budget=budget)
    assert jnp.allclose(out2, ref2, atol=1e-5, rtol=1e-5), "mismatch (multi-block)"

    # Irregular size -> pure-JAX dispatch path (n % 128 != 0).
    k3 = jax.random.PRNGKey(2)
    x3 = jax.random.normal(k3, (17, 31), dtype=jnp.float32) * 200.0
    out3 = jax.block_until_ready(evidence_scaler(x3, dim=31, budget=budget))
    ref3 = evidence_scaler_ref(x3, dim=31, budget=budget)
    assert jnp.allclose(out3, ref3, atol=1e-5, rtol=1e-5), "mismatch (fallback)"

    print("KERNEL_OK")
</pallas_src>

<mosaic_0001>
module attributes {stable_mosaic.version = 11 : i64} {
  func.func @_evidence_scaler_kernel(%arg0: i32, %arg1: memref<1x512xf32, #tpu.memory_space<vmem>>, %arg2: memref<1x512xf32, #tpu.memory_space<vmem>>) attributes {dimension_semantics = [#tpu.dimension_semantics<parallel>], iteration_bounds = array<i64: 1>, scalar_prefetch = 0 : i64, scratch_operands = 0 : i64, tpu.core_type = #tpu.core_type<tc>, window_params = [{transform_indices = @transform_0, window_bounds = array<i64: 1, 512>}, {transform_indices = @transform_1, window_bounds = array<i64: 1, 512>}]} {
    %c0 = arith.constant 0 : index
    %c0_0 = arith.constant 0 : index
    %0 = vector.load %arg1[%c0, %c0_0] : memref<1x512xf32, #tpu.memory_space<vmem>>, vector<1x512xf32>
    %cst = arith.constant 1.000000e-01 : f32
    %1 = vector.broadcast %cst : f32 to vector<1x512xf32>
    %2 = arith.mulf %0, %1 : vector<1x512xf32>
    %cst_1 = arith.constant 4.04963875 : f32
    %3 = vector.broadcast %cst_1 : f32 to vector<1x512xf32>
    %4 = arith.addf %2, %3 : vector<1x512xf32>
    %cst_2 = arith.constant -3.000000e+01 : f32
    %cst_3 = arith.constant 3.000000e+01 : f32
    %5 = vector.broadcast %cst_2 : f32 to vector<1x512xf32>
    %6 = arith.maximumf %5, %4 : vector<1x512xf32>
    %7 = vector.broadcast %cst_3 : f32 to vector<1x512xf32>
    %8 = arith.minimumf %7, %6 : vector<1x512xf32>
    %c0_4 = arith.constant 0 : index
    %c0_5 = arith.constant 0 : index
    %9 = vector.load %arg2[%c0_4, %c0_5] : memref<1x512xf32, #tpu.memory_space<vmem>>, vector<1x512xf32>
    tpu.vector_store %arg2[%c0_4, %c0_5], %8 {strides = array<i32>} : memref<1x512xf32, #tpu.memory_space<vmem>>, vector<1x512xf32>,
    return
  }
  func.func @transform_0(%arg0: i32) -> (i32, i32) {
    %c0_i32 = arith.constant 0 : i32
    %c0_i32_0 = arith.constant 0 : i32
    return %arg0, %c0_i32 : i32, i32
  }
  func.func @transform_1(%arg0: i32) -> (i32, i32) {
    %c0_i32 = arith.constant 0 : i32
    %c0_i32_0 = arith.constant 0 : i32
    return %arg0, %c0_i32 : i32, i32
  }
}

</mosaic_0001>

<llo_original>
// kernel: tpu_custom_call.1
$region0: #{tpu_custom_call.1}
  #allocation0 [shape = 'u32[]', space=smem, size = 0x4, offset = 0x4, fixed_abs, tag = 'smem constant byte address 0x4 - core index']
  #allocation1 [shape = 'u32[72,128]{1,0:T(1,128)}', space=vmem, size = 0x9000, scoped, tag = 'internal scratch']
  %s0 = inlined_call_operand.hbm [shape: f32[1,512], index: 0, kind: input, shape index: {}]
  %s1 = inlined_call_operand.hbm [shape: f32[1,512], index: 1, kind: output, shape index: {}]
  %s2 = sld [smem:[#allocation0]]
  $region18: #{tpu_custom_call.1} parent=0
    _
  %s4 = ssub.s32 1, %s2
  %s5 = scalar_select 0, %s4, %s2
  $region1: #{tpu_custom_call.1} parent=0
    #allocation2 [shape = 'u8[2048]{0}', space=vmem, size = 0x800, scoped, tag = 'input window, operand 0, single buffered']
    #allocation3 [shape = 's32[1]{0}', space=sflag, size = 0x4, scoped, tag = 'scoped memory for tpu_custom_call.1']
    #allocation4 [shape = 's32[1]{0}', space=sflag, size = 0x4, scoped, tag = 'scoped memory for tpu_custom_call.1']
    #allocation5 [shape = 'u8[2048]{0}', space=vmem, size = 0x800, scoped, tag = 'output window, operand 0, single buffered']
    %6 = vsyncpa [#allocation3], 0
    %7 = vsyncpa [#allocation4], 0
    // Predicated region
    $region2: #{tpu_custom_call.1} parent=1 // pred_check
      _
    $region3: #{tpu_custom_call.1} parent=1 // pred_check_branch
      %9 = sbr.rel (0) target = $region5
    $region4: #{tpu_custom_call.1} parent=1 // pred_region
      %11 = vsyncadd [#allocation3], 0
      %s13 = sshll.u32 %s0, 4
      %s14 = int_to_ptr.hbm [resolvable:$true] %s13
      %s15 = sshll.u32 [#allocation2], 4
      %s16 = int_to_ptr.vmem [resolvable:$true] %s15
      %18 = dma.hbm_to_vmem [thread:$0]  %s14, 64, %s16, [#allocation3]
    $region5: #{tpu_custom_call.1} parent=1 // pred_fallthru
      _
    // Predicated region
    $region6: #{tpu_custom_call.1} parent=1 // pred_check
      _
    $region7: #{tpu_custom_call.1} parent=1 // pred_check_branch
      %20 = sbr.rel (0) target = $region9
    $region8: #{tpu_custom_call.1} parent=1 // pred_region
      %22 = dma.done [#allocation3], 64
    $region9: #{tpu_custom_call.1} parent=1 // pred_fallthru
      _
    %v23 = vld [vmem:[#allocation2] sm:$0xf]
    %v24 = vmul.f32 %v23, 0.1
    %v25 = vadd.f32 %v24, 4.0496387
    %v26 = vmax.f32 %v25, -30.0
    %v27 = vmin.f32 %v26, 30.0
    %v28 = vlaneseq
    %vm29 = vcmp.ge.s32.totalorder %v28, 0
    %vm30 = vcmp.lt.s32.totalorder %v28, 512
    %vm31 = vmand %vm29, %vm30
    %32 = vst.msk [vmem:[#allocation5] sm:$0xf] %vm31, %v27
    // Predicated region
    $region10: #{tpu_custom_call.1} parent=1 // pred_check
      _
    $region11: #{tpu_custom_call.1} parent=1 // pred_check_branch
      %34 = sbr.rel (0) target = $region13
    $region12: #{tpu_custom_call.1} parent=1 // pred_region
      %36 = vsyncadd [#allocation4], 0
      %s38 = sshll.u32 [#allocation5], 4
      %s39 = int_to_ptr.vmem [resolvable:$true] %s38
      %s40 = sshll.u32 %s1, 4
      %s41 = int_to_ptr.hbm [resolvable:$true] %s40
      %43 = dma.vmem_to_hbm [thread:$0]  %s39, 64, %s41, [#allocation4]
    $region13: #{tpu_custom_call.1} parent=1 // pred_fallthru
      _
    // Predicated region
    $region14: #{tpu_custom_call.1} parent=1 // pred_check
      _
    $region15: #{tpu_custom_call.1} parent=1 // pred_check_branch
      %45 = sbr.rel (0) target = $region17
    $region16: #{tpu_custom_call.1} parent=1 // pred_region
      %47 = dma.done [#allocation4], 64
    $region17: #{tpu_custom_call.1} parent=1 // pred_fallthru
      _
    %48 = vsyncpa [#allocation3], 1
    %49 = vsyncpa [#allocation4], 1

</llo_original>
